<compile_context>
chip_gen: v6e
topology: v6e:2x2x1
jax: 0.10.0
libtpu: 0.0.40
codegen_flags: <defaults>
</compile_context>

<pallas_src>
import functools

import jax
import jax.numpy as jnp
from jax import lax
from jax.experimental import pallas as pl
from jax.experimental.pallas import tpu as pltpu

anchor_h = 19.15
anchor_w = 85.72
times_of_down_sampling = 5
field_of_grid_cell = 2 ** times_of_down_sampling   # 32
num_anchors = 3
theta_margin = 180.0 / num_anchors                 # 60.0

LANES = 128
TARGET_BLOCK_BYTES = 8 << 20                       # ~8 MiB input blocks


# ----------------------------------------------------------------------------
# Fused kernel: 1x1-conv objectness (scalar-weight VPU FMAs on dense (TS,128)
# planes) + streaming global first-match argmax.  Output: one int32 flat
# pixel index (n*HW + h*W + w).
# ----------------------------------------------------------------------------
def _objmax_kernel(x_ref, wb_ref, idx_ref, best_s, best_i,
                   *, A, Cin, HW, TS, need_mask):
    n = pl.program_id(0)
    t = pl.program_id(1)
    first = (n == 0) & (t == 0)
    last = ((n == pl.num_programs(0) - 1) &
            (t == pl.num_programs(1) - 1))

    @pl.when(first)
    def _():
        best_s[...] = jnp.full_like(best_s, -jnp.inf)
        best_i[...] = jnp.zeros_like(best_i)

    # ---- objectness scores for all anchors, max-combined ------------------
    xs = [x_ref[0, k].astype(jnp.float32) for k in range(Cin)]   # (TS, 128)
    combined = None
    for a in range(A):
        s = xs[0] * wb_ref[a * Cin]
        for k in range(1, Cin):
            s = s + xs[k] * wb_ref[a * Cin + k]
        s = s + wb_ref[A * Cin + a]                               # bias
        combined = s if combined is None else jnp.maximum(combined, s)

    # ---- per-element pixel index inside the image -------------------------
    row_i = lax.broadcasted_iota(jnp.int32, (TS, LANES), 0)
    lane_i = lax.broadcasted_iota(jnp.int32, (TS, LANES), 1)
    pix = row_i * LANES + lane_i + t * (TS * LANES)

    if need_mask:   # tail of last 128-lane row and/or overhanging last tile
        combined = jnp.where(pix < HW, combined, -jnp.inf)

    # ---- tile max + first-match flat index (global (n, h, w) order) -------
    m_lane = jnp.max(combined, axis=1, keepdims=True)
    tile_max = jnp.max(m_lane, axis=0, keepdims=True)             # (1, 1)

    gpix = pix + n * HW
    big = jnp.int32(jnp.iinfo(jnp.int32).max)
    cand = jnp.where(combined == tile_max, gpix, big)
    c_lane = jnp.min(cand, axis=1, keepdims=True)
    sel = jnp.min(c_lane, axis=0, keepdims=True)                  # (1, 1) i32

    # ---- running best (strict '>' keeps the earliest tile on ties) --------
    upd = tile_max > best_s[...]
    best_s[...] = jnp.where(upd, tile_max, best_s[...])
    best_i[...] = jnp.where(upd, sel, best_i[...])

    @pl.when(last)
    def _():
        idx_ref[...] = best_i[...]


# ----------------------------------------------------------------------------
# Wrapper: kernel finds the winning pixel; decode of that single pixel is done
# in plain JAX (tiny follow-up, as suggested by the review).
# ----------------------------------------------------------------------------
def detect_single_image(x_nchw, conv_w, conv_b):
    N, Cin, H, W = x_nchw.shape
    A = num_anchors
    HW = H * W
    S = -(-HW // LANES)                        # 128-pixel rows per image

    # pixels dense on (sublane, lane): (N, Cin, S, 128)
    x3 = x_nchw.reshape(N, Cin, HW)
    if HW != S * LANES:
        # TODO(synk): sub-128 tail pad still copies the map once; pad values
        # are masked to -inf inside the kernel so content is irrelevant.
        x3 = jnp.pad(x3, ((0, 0), (0, 0), (0, S * LANES - HW)))
    x4 = x3.reshape(N, Cin, S, LANES)

    # block sizing: ~8 MiB per input block (good for v5e/v6e, needed for v7x)
    bytes_per_row = Cin * LANES * x4.dtype.itemsize
    ts_cap = max(8, (TARGET_BLOCK_BYTES // bytes_per_row) // 8 * 8)
    TS = S if S <= ts_cap else ts_cap
    T = -(-S // TS)
    need_mask = (HW != S * LANES) or (S != T * TS)

    block_bytes = TS * bytes_per_row
    vmem_limit = int(min(max(2 * block_bytes + (4 << 20), 16 << 20), 48 << 20))

    # objectness weights/biases packed into one SMEM scalar table
    obj = jnp.arange(A) * 6
    w_obj = conv_w.astype(jnp.float32)[:, obj].T          # (A, Cin)
    b_obj = conv_b.astype(jnp.float32)[obj]                # (A,)
    wb = jnp.concatenate([w_obj.reshape(-1), b_obj])       # (A*Cin + A,)

    kern = functools.partial(_objmax_kernel, A=A, Cin=Cin, HW=HW, TS=TS,
                             need_mask=need_mask)

    idx = pl.pallas_call(
        kern,
        out_shape=jax.ShapeDtypeStruct((1, 1), jnp.int32),
        grid_spec=pltpu.PrefetchScalarGridSpec(
            num_scalar_prefetch=0,
            grid=(N, T),
            in_specs=[
                pl.BlockSpec((1, Cin, TS, LANES), lambda n, t: (n, 0, t, 0)),
                pl.BlockSpec(memory_space=pltpu.MemorySpace.SMEM),
            ],
            out_specs=pl.BlockSpec((1, 1), lambda n, t: (0, 0)),
            scratch_shapes=[
                pltpu.VMEM((1, 1), jnp.float32),   # running best score
                pltpu.VMEM((1, 1), jnp.int32),     # running best flat pixel
            ]),
        compiler_params=pltpu.CompilerParams(
            dimension_semantics=("arbitrary", "arbitrary"),
            vmem_limit_bytes=vmem_limit),
        cost_estimate=pl.CostEstimate(
            flops=2 * N * S * LANES * Cin * A,
            transcendentals=0,
            bytes_accessed=int(N * Cin * S * LANES * x4.dtype.itemsize) + 64),
    )(x4, wb)

    # ---- finalize on the single winning pixel (plain JAX, tiny) -----------
    flat = idx[0, 0]
    n_sel = flat // HW
    r = flat % HW
    h_idx = r // W
    w_idx = r % W

    zero = jnp.int32(0)
    x_sel = lax.dynamic_slice(
        x_nchw, (n_sel, zero, h_idx, w_idx), (1, Cin, 1, 1)).reshape(Cin)
    out18 = (x_sel.astype(jnp.float32) @ conv_w.astype(jnp.float32)
             + conv_b.astype(jnp.float32)).reshape(A, 6)
    a_idx = jnp.argmax(out18[:, 0])                 # first-match anchor
    bias = jnp.take(out18, a_idx, axis=0)

    conf = jax.nn.sigmoid(bias[0])
    cx = (w_idx.astype(jnp.float32) + jax.nn.sigmoid(bias[1])) * field_of_grid_cell
    cy = (h_idx.astype(jnp.float32) + jax.nn.sigmoid(bias[2])) * field_of_grid_cell
    bw = anchor_w * jnp.exp(bias[3])
    bh = anchor_h * jnp.exp(bias[4])
    th = (a_idx.astype(jnp.float32) + jax.nn.sigmoid(bias[5])) * theta_margin
    return jnp.stack([conf, cx, cy, bw, bh, th])   # [conf, cx, cy, w, h, theta]


# ----------------------------------------------------------------------------
# Pure-JAX reference (same semantics as the PyTorch module)
# ----------------------------------------------------------------------------
def _reference(x_nchw, conv_w, conv_b):
    N, C, H, W = x_nchw.shape
    x_flat = jnp.transpose(x_nchw, (0, 2, 3, 1)).reshape(N * H * W, C)
    out = x_flat @ conv_w + conv_b[None, :]
    out = out.reshape(N, H, W, num_anchors, 6)
    scores = out[..., 0]
    flat = jnp.argmax(scores.reshape(-1))
    a = flat % num_anchors
    w_i = (flat // num_anchors) % W
    h_i = (flat // (num_anchors * W)) % H
    bias = out.reshape(-1, 6)[flat]
    conf = jax.nn.sigmoid(bias[0])
    cx = (w_i + jax.nn.sigmoid(bias[1])) * field_of_grid_cell
    cy = (h_i + jax.nn.sigmoid(bias[2])) * field_of_grid_cell
    bw = anchor_w * jnp.exp(bias[3])
    bh = anchor_h * jnp.exp(bias[4])
    th = (a + jax.nn.sigmoid(bias[5])) * theta_margin
    return jnp.stack([conf, cx, cy, bw, bh, th])


if __name__ == "__main__":
    key = jax.random.PRNGKey(0)
    k_x, k_w, k_b = jax.random.split(key, 3)

    N, Cin, H, W = 2, 4, 16, 16
    Cout = num_anchors * 6                         # 18

    x = jax.random.normal(k_x, (N, Cin, H, W), dtype=jnp.float32)
    conv_w = 0.1 * jax.random.normal(k_w, (Cin, Cout), dtype=jnp.float32)
    conv_b = 0.1 * jax.random.normal(k_b, (Cout,), dtype=jnp.float32)

    detect = jax.jit(detect_single_image)
    result = detect(x, conv_w, conv_b)
    jax.block_until_ready(result)

    ref = _reference(x, conv_w, conv_b)
    assert result.shape == (6,)
    assert jnp.allclose(result, ref, rtol=1e-4, atol=1e-4), (result, ref)

    print("KERNEL_OK")
</pallas_src>

<mosaic_0001>
module attributes {stable_mosaic.version = 11 : i64} {
  func.func @_objmax_kernel(%arg0: i32, %arg1: i32, %arg2: memref<1x4x2x128xf32, #tpu.memory_space<vmem>>, %arg3: memref<15xf32, #tpu.memory_space<smem>>, %arg4: memref<1x1xi32, #tpu.memory_space<vmem>>, %arg5: memref<1x1xf32, #tpu.memory_space<vmem>>, %arg6: memref<1x1xi32, #tpu.memory_space<vmem>>) attributes {dimension_semantics = [#tpu.dimension_semantics<arbitrary>, #tpu.dimension_semantics<arbitrary>], iteration_bounds = array<i64: 2, 1>, scalar_prefetch = 0 : i64, scratch_operands = 2 : i64, tpu.core_type = #tpu.core_type<tc>, window_params = [{transform_indices = @transform_0, window_bounds = array<i64: 1, 4, 2, 128>}, {transform_indices = @transform_1, window_bounds = array<i64: 15>}, {pipeline_mode = #tpu.pipeline_mode<synchronous>, transform_indices = @transform_2, window_bounds = array<i64: 1, 1>}]} {
    %c0_i32 = arith.constant 0 : i32
    %0 = arith.cmpi eq, %arg0, %c0_i32 : i32
    %c0_i32_0 = arith.constant 0 : i32
    %1 = arith.cmpi eq, %arg1, %c0_i32_0 : i32
    %2 = arith.andi %0, %1 : i1
    %c1_i32 = arith.constant 1 : i32
    %3 = arith.cmpi eq, %arg0, %c1_i32 : i32
    %c0_i32_1 = arith.constant 0 : i32
    %4 = arith.cmpi eq, %arg1, %c0_i32_1 : i32
    %5 = arith.andi %3, %4 : i1
    %6 = arith.extui %2 : i1 to i32
    %c0_i32_2 = arith.constant 0 : i32
    %7 = arith.cmpi ne, %6, %c0_i32_2 : i32
    scf.if %7 {
      %cst_34 = arith.constant 0xFF800000 : f32
      %105 = vector.broadcast %cst_34 : f32 to vector<1x1xf32>
      %c0_35 = arith.constant 0 : index
      %c0_36 = arith.constant 0 : index
      %106 = vector.load %arg5[%c0_35, %c0_36] : memref<1x1xf32, #tpu.memory_space<vmem>>, vector<1x1xf32>
      tpu.vector_store %arg5[%c0_35, %c0_36], %105 {strides = array<i32>} : memref<1x1xf32, #tpu.memory_space<vmem>>, vector<1x1xf32>,
      %c0_i32_37 = arith.constant 0 : i32
      %107 = vector.broadcast %c0_i32_37 : i32 to vector<1x1xi32>
      %c0_38 = arith.constant 0 : index
      %c0_39 = arith.constant 0 : index
      %108 = vector.load %arg6[%c0_38, %c0_39] : memref<1x1xi32, #tpu.memory_space<vmem>>, vector<1x1xi32>
      tpu.vector_store %arg6[%c0_38, %c0_39], %107 {strides = array<i32>} : memref<1x1xi32, #tpu.memory_space<vmem>>, vector<1x1xi32>,
    } else {
    }
    %c0 = arith.constant 0 : index
    %c0_3 = arith.constant 0 : index
    %c0_4 = arith.constant 0 : index
    %c0_5 = arith.constant 0 : index
    %8 = vector.load %arg2[%c0, %c0_3, %c0_4, %c0_5] : memref<1x4x2x128xf32, #tpu.memory_space<vmem>>, vector<1x1x2x128xf32>
    %9 = vector.shape_cast %8 : vector<1x1x2x128xf32> to vector<2x128xf32>
    %c0_6 = arith.constant 0 : index
    %c1 = arith.constant 1 : index
    %c0_7 = arith.constant 0 : index
    %c0_8 = arith.constant 0 : index
    %10 = vector.load %arg2[%c0_6, %c1, %c0_7, %c0_8] : memref<1x4x2x128xf32, #tpu.memory_space<vmem>>, vector<1x1x2x128xf32>
    %11 = vector.shape_cast %10 : vector<1x1x2x128xf32> to vector<2x128xf32>
    %c0_9 = arith.constant 0 : index
    %c2 = arith.constant 2 : index
    %c0_10 = arith.constant 0 : index
    %c0_11 = arith.constant 0 : index
    %12 = vector.load %arg2[%c0_9, %c2, %c0_10, %c0_11] : memref<1x4x2x128xf32, #tpu.memory_space<vmem>>, vector<1x1x2x128xf32>
    %13 = vector.shape_cast %12 : vector<1x1x2x128xf32> to vector<2x128xf32>
    %c0_12 = arith.constant 0 : index
    %c3 = arith.constant 3 : index
    %c0_13 = arith.constant 0 : index
    %c0_14 = arith.constant 0 : index
    %14 = vector.load %arg2[%c0_12, %c3, %c0_13, %c0_14] : memref<1x4x2x128xf32, #tpu.memory_space<vmem>>, vector<1x1x2x128xf32>
    %15 = vector.shape_cast %14 : vector<1x1x2x128xf32> to vector<2x128xf32>
    %c0_15 = arith.constant 0 : index
    %16 = memref.load %arg3[%c0_15] : memref<15xf32, #tpu.memory_space<smem>>
    %17 = vector.broadcast %16 : f32 to vector<2x128xf32>
    %18 = arith.mulf %9, %17 : vector<2x128xf32>
    %c1_16 = arith.constant 1 : index
    %19 = memref.load %arg3[%c1_16] : memref<15xf32, #tpu.memory_space<smem>>
    %20 = vector.broadcast %19 : f32 to vector<2x128xf32>
    %21 = arith.mulf %11, %20 : vector<2x128xf32>
    %22 = arith.addf %18, %21 : vector<2x128xf32>
    %c2_17 = arith.constant 2 : index
    %23 = memref.load %arg3[%c2_17] : memref<15xf32, #tpu.memory_space<smem>>
    %24 = vector.broadcast %23 : f32 to vector<2x128xf32>
    %25 = arith.mulf %13, %24 : vector<2x128xf32>
    %26 = arith.addf %22, %25 : vector<2x128xf32>
    %c3_18 = arith.constant 3 : index
    %27 = memref.load %arg3[%c3_18] : memref<15xf32, #tpu.memory_space<smem>>
    %28 = vector.broadcast %27 : f32 to vector<2x128xf32>
    %29 = arith.mulf %15, %28 : vector<2x128xf32>
    %30 = arith.addf %26, %29 : vector<2x128xf32>
    %c12 = arith.constant 12 : index
    %31 = memref.load %arg3[%c12] : memref<15xf32, #tpu.memory_space<smem>>
    %32 = vector.broadcast %31 : f32 to vector<2x128xf32>
    %33 = arith.addf %30, %32 : vector<2x128xf32>
    %c4 = arith.constant 4 : index
    %34 = memref.load %arg3[%c4] : memref<15xf32, #tpu.memory_space<smem>>
    %35 = vector.broadcast %34 : f32 to vector<2x128xf32>
    %36 = arith.mulf %9, %35 : vector<2x128xf32>
    %c5 = arith.constant 5 : index
    %37 = memref.load %arg3[%c5] : memref<15xf32, #tpu.memory_space<smem>>
    %38 = vector.broadcast %37 : f32 to vector<2x128xf32>
    %39 = arith.mulf %11, %38 : vector<2x128xf32>
    %40 = arith.addf %36, %39 : vector<2x128xf32>
    %c6 = arith.constant 6 : index
    %41 = memref.load %arg3[%c6] : memref<15xf32, #tpu.memory_space<smem>>
    %42 = vector.broadcast %41 : f32 to vector<2x128xf32>
    %43 = arith.mulf %13, %42 : vector<2x128xf32>
    %44 = arith.addf %40, %43 : vector<2x128xf32>
    %c7 = arith.constant 7 : index
    %45 = memref.load %arg3[%c7] : memref<15xf32, #tpu.memory_space<smem>>
    %46 = vector.broadcast %45 : f32 to vector<2x128xf32>
    %47 = arith.mulf %15, %46 : vector<2x128xf32>
    %48 = arith.addf %44, %47 : vector<2x128xf32>
    %c13 = arith.constant 13 : index
    %49 = memref.load %arg3[%c13] : memref<15xf32, #tpu.memory_space<smem>>
    %50 = vector.broadcast %49 : f32 to vector<2x128xf32>
    %51 = arith.addf %48, %50 : vector<2x128xf32>
    %52 = arith.maximumf %33, %51 : vector<2x128xf32>
    %c8 = arith.constant 8 : index
    %53 = memref.load %arg3[%c8] : memref<15xf32, #tpu.memory_space<smem>>
    %54 = vector.broadcast %53 : f32 to vector<2x128xf32>
    %55 = arith.mulf %9, %54 : vector<2x128xf32>
    %c9 = arith.constant 9 : index
    %56 = memref.load %arg3[%c9] : memref<15xf32, #tpu.memory_space<smem>>
    %57 = vector.broadcast %56 : f32 to vector<2x128xf32>
    %58 = arith.mulf %11, %57 : vector<2x128xf32>
    %59 = arith.addf %55, %58 : vector<2x128xf32>
    %c10 = arith.constant 10 : index
    %60 = memref.load %arg3[%c10] : memref<15xf32, #tpu.memory_space<smem>>
    %61 = vector.broadcast %60 : f32 to vector<2x128xf32>
    %62 = arith.mulf %13, %61 : vector<2x128xf32>
    %63 = arith.addf %59, %62 : vector<2x128xf32>
    %c11 = arith.constant 11 : index
    %64 = memref.load %arg3[%c11] : memref<15xf32, #tpu.memory_space<smem>>
    %65 = vector.broadcast %64 : f32 to vector<2x128xf32>
    %66 = arith.mulf %15, %65 : vector<2x128xf32>
    %67 = arith.addf %63, %66 : vector<2x128xf32>
    %c14 = arith.constant 14 : index
    %68 = memref.load %arg3[%c14] : memref<15xf32, #tpu.memory_space<smem>>
    %69 = vector.broadcast %68 : f32 to vector<2x128xf32>
    %70 = arith.addf %67, %69 : vector<2x128xf32>
    %71 = arith.maximumf %52, %70 : vector<2x128xf32>
    %72 = tpu.iota {dimensions = array<i32: 0>} : vector<2x128xi32>
    %73 = tpu.iota {dimensions = array<i32: 1>} : vector<2x128xi32>
    %c128_i32 = arith.constant 128 : i32
    %74 = vector.broadcast %c128_i32 : i32 to vector<2x128xi32>
    %75 = arith.muli %72, %74 : vector<2x128xi32>
    %76 = arith.addi %75, %73 : vector<2x128xi32>
    %c256_i32 = arith.constant 256 : i32
    %77 = arith.muli %arg1, %c256_i32 : i32
    %78 = vector.broadcast %77 : i32 to vector<2x128xi32>
    %79 = arith.addi %76, %78 : vector<2x128xi32>
    %cst = arith.constant dense<0xFF800000> : vector<2xf32>
    %80 = vector.multi_reduction <maximumf>, %71, %cst [1] : vector<2x128xf32> to vector<2xf32>
    %81 = vector.shape_cast %80 : vector<2xf32> to vector<2x1xf32>
    %cst_19 = arith.constant dense<0xFF800000> : vector<1xf32>
    %82 = vector.multi_reduction <maximumf>, %81, %cst_19 [0] : vector<2x1xf32> to vector<1xf32>
    %83 = vector.shape_cast %82 : vector<1xf32> to vector<1x1xf32>
    %c256_i32_20 = arith.constant 256 : i32
    %84 = arith.muli %arg0, %c256_i32_20 : i32
    %85 = vector.broadcast %84 : i32 to vector<2x128xi32>
    %86 = arith.addi %79, %85 : vector<2x128xi32>
    %87 = vector.broadcast %83 : vector<1x1xf32> to vector<2x128xf32>
    %88 = arith.cmpf oeq, %71, %87 : vector<2x128xf32>
    %c2147483647_i32 = arith.constant 2147483647 : i32
    %89 = vector.broadcast %c2147483647_i32 : i32 to vector<2x128xi32>
    %90 = arith.select %88, %86, %89 : vector<2x128xi1>, vector<2x128xi32>
    %cst_21 = arith.constant dense<2147483647> : vector<2xi32>
    %91 = vector.multi_reduction <minsi>, %90, %cst_21 [1] : vector<2x128xi32> to vector<2xi32>
    %92 = vector.shape_cast %91 : vector<2xi32> to vector<2x1xi32>
    %cst_22 = arith.constant dense<2147483647> : vector<1xi32>
    %93 = vector.multi_reduction <minsi>, %92, %cst_22 [0] : vector<2x1xi32> to vector<1xi32>
    %94 = vector.shape_cast %93 : vector<1xi32> to vector<1x1xi32>
    %c0_23 = arith.constant 0 : index
    %c0_24 = arith.constant 0 : index
    %95 = vector.load %arg5[%c0_23, %c0_24] : memref<1x1xf32, #tpu.memory_space<vmem>>, vector<1x1xf32>
    %96 = arith.cmpf ogt, %83, %95 : vector<1x1xf32>
    %c0_25 = arith.constant 0 : index
    %c0_26 = arith.constant 0 : index
    %97 = vector.load %arg5[%c0_25, %c0_26] : memref<1x1xf32, #tpu.memory_space<vmem>>, vector<1x1xf32>
    %98 = arith.select %96, %83, %97 : vector<1x1xi1>, vector<1x1xf32>
    %c0_27 = arith.constant 0 : index
    %c0_28 = arith.constant 0 : index
    %99 = vector.load %arg5[%c0_27, %c0_28] : memref<1x1xf32, #tpu.memory_space<vmem>>, vector<1x1xf32>
    tpu.vector_store %arg5[%c0_27, %c0_28], %98 {strides = array<i32>} : memref<1x1xf32, #tpu.memory_space<vmem>>, vector<1x1xf32>,
    %c0_29 = arith.constant 0 : index
    %c0_30 = arith.constant 0 : index
    %100 = vector.load %arg6[%c0_29, %c0_30] : memref<1x1xi32, #tpu.memory_space<vmem>>, vector<1x1xi32>
    %101 = arith.select %96, %94, %100 : vector<1x1xi1>, vector<1x1xi32>
    %c0_31 = arith.constant 0 : index
    %c0_32 = arith.constant 0 : index
    %102 = vector.load %arg6[%c0_31, %c0_32] : memref<1x1xi32, #tpu.memory_space<vmem>>, vector<1x1xi32>
    tpu.vector_store %arg6[%c0_31, %c0_32], %101 {strides = array<i32>} : memref<1x1xi32, #tpu.memory_space<vmem>>, vector<1x1xi32>,
    %103 = arith.extui %5 : i1 to i32
    %c0_i32_33 = arith.constant 0 : i32
    %104 = arith.cmpi ne, %103, %c0_i32_33 : i32
    scf.if %104 {
      %c0_34 = arith.constant 0 : index
      %c0_35 = arith.constant 0 : index
      %105 = vector.load %arg6[%c0_34, %c0_35] : memref<1x1xi32, #tpu.memory_space<vmem>>, vector<1x1xi32>
      %c0_36 = arith.constant 0 : index
      %c0_37 = arith.constant 0 : index
      %106 = vector.load %arg4[%c0_36, %c0_37] : memref<1x1xi32, #tpu.memory_space<vmem>>, vector<1x1xi32>
      tpu.vector_store %arg4[%c0_36, %c0_37], %105 {strides = array<i32>} : memref<1x1xi32, #tpu.memory_space<vmem>>, vector<1x1xi32>,
    } else {
    }
    return
  }
  func.func @transform_0(%arg0: i32, %arg1: i32) -> (i32, i32, i32, i32) {
    %c0_i32 = arith.constant 0 : i32
    %c0_i32_0 = arith.constant 0 : i32
    %c0_i32_1 = arith.constant 0 : i32
    return %arg0, %c0_i32, %arg1, %c0_i32_0 : i32, i32, i32, i32
  }
  func.func @transform_1(%arg0: i32, %arg1: i32) -> i32 {
    %c0_i32 = arith.constant 0 : i32
    %c0_i32_0 = arith.constant 0 : i32
    return %c0_i32 : i32
  }
  func.func @transform_2(%arg0: i32, %arg1: i32) -> (i32, i32) {
    %c0_i32 = arith.constant 0 : i32
    %c0_i32_0 = arith.constant 0 : i32
    %c0_i32_1 = arith.constant 0 : i32
    return %c0_i32, %c0_i32_0 : i32, i32
  }
}

</mosaic_0001>

<llo_original>
// kernel: detect_single_image.1
$region0: #{detect_single_image.1}
  #allocation0 [shape = 'u32[]', space=smem, size = 0x4, offset = 0x4, fixed_abs, tag = 'smem constant byte address 0x4 - core index']
  #allocation1 [shape = 'u32[144,128]{1,0:T(1,128)}', space=vmem, size = 0x12000, scoped, tag = 'internal scratch']
  #allocation2 [shape = 'f32[1,1]{1,0:T(1,128)}', space=vmem, size = 0x200, scoped, tag = 'scratch operand']
  #allocation3 [shape = 's32[1,1]{1,0:T(1,128)}', space=vmem, size = 0x200, scoped, tag = 'scratch operand']
  %s0 = inlined_call_operand.vmem [shape: f32[2,4,2,128], index: 0, kind: input, shape index: {}]
  %s1 = inlined_call_operand.vmem [shape: f32[15], index: 1, kind: input, shape index: {}]
  %s2 = inlined_call_operand.hbm [shape: s32[1,1], index: 2, kind: output, shape index: {}]
  %s3 = sld [smem:[#allocation0]]
  $region53: #{detect_single_image.1} parent=0
    _
  %s5 = ssub.s32 1, %s3
  %s6 = scalar_select 0, %s5, %s3
  $region1: #{detect_single_image.1} parent=0
    #allocation4 [shape = 'u8[512]{0}', space=smem, size = 0x200, scoped, tag = 'input window, operand 1, single buffered']
    #allocation5 [shape = 's32[2]{0}', space=sflag, size = 0x8, scoped, tag = 'scoped memory for detect_single_image.1']
    #allocation6 [shape = 's32[2]{0}', space=sflag, size = 0x8, scoped, tag = 'scoped memory for detect_single_image.1']
    #allocation7 [shape = 'u8[512]{0}', space=vmem, size = 0x400, scoped, tag = 'output window, operand 0, single buffered']
    %7 = vsyncpa [#allocation6], 0
    %8 = vsyncpa [#allocation5], 0
    loop: start=0, step=1, limit=4
    $region2: #{detect_single_image.1} parent=1 // loop_pre_header
      _
    $region3: #{detect_single_image.1} parent=1 // loop_header
      %s10 = sphi 0, %s14
      %p11 = scmp.ge.s32.totalorder %s10, 4
      %s17 = sphi 0, %s29
      %s18 = sphi 0, %s25
      %s19 = sphi 0, %s17
      %s20 = sphi 0, %s18
      %s21 = sphi 0, %s19
      %s22 = sphi 0, %s20
      %s34 = sphi 0, %s36
      %s37 = sphi 0, %s34
      %s38 = sphi 0, %s37
      %s54 = sphi 0, %s38
      %s58 = sphi 0, %s58
      %s60 = sphi 0, %s58
      %s61 = sphi 0, %s60
      %s75 = sphi 0, %s61
      %s79 = sphi 0, %s79
      %s81 = sphi 0, %s79
      %s82 = sphi 0, %s81
      %s96 = sphi 0, %s82
    $region4: #{detect_single_image.1} parent=1 // loop_header_branch
      %13 = sbr.rel (%p11) target = $region8
    $region5: #{detect_single_image.1} parent=1 // loop_body
      %s15 = ssub.s32 %s10, 1
      %s16 = ssub.s32 %s10, 2
      %s23 = sadd.s32 1, %s18
      %p24 = scmp.ge.s32.totalorder %s23, 1
      %s25 = scalar_select %p24, 0, %s23
      %s26 = sadd.s32 1, %s17
      %s27 = scalar_select %p24, %s26, %s17
      %p28 = scmp.ge.s32.totalorder %s27, 2
      %s29 = scalar_select %p28, 0, %s27
      %s30 = ssub.s32 %s17, %s29
      %s31 = ssub.s32 %s18, %s25
      %s32 = sor.u32 %s30, %s31
      %p33 = scmp.eq.s32.totalorder %s32, 0
      %s35 = sadd.s32 %s34, 1
      %s36 = scalar_select %p33, %s34, %s35
      %p39 = pneg %p33
      %p40 = scmp.eq.s32.totalorder %s10, 1
      %p41 = por %p39, %p40
      %p42 = scmp.ne.s32.totalorder %s34, %s37
      %p43 = scmp.eq.s32.totalorder %s10, 0
      %p44 = por %p42, %p43
      %p45 = scmp.ne.s32.totalorder %s34, %s37
      %p46 = scmp.eq.s32.totalorder %s15, 1
      %p47 = por %p45, %p46
      %p48 = scmp.ne.s32.totalorder %s37, %s38
      %p49 = scmp.eq.s32.totalorder %s15, 0
      %p50 = por %p48, %p49
      %p51 = scmp.ne.s32.totalorder %s37, %s38
      %p52 = scmp.eq.s32.totalorder %s16, 1
      %p53 = por %p51, %p52
      %p55 = scmp.ne.s32.totalorder %s38, %s54
      %p56 = scmp.eq.s32.totalorder %s16, 0
      %p57 = por %p55, %p56
      %s59 = sadd.s32 %s58, 1
      %p62 = scmp.eq.s32.totalorder %s10, 1
      %p63 = scmp.ne.s32.totalorder %s58, %s60
      %p64 = scmp.eq.s32.totalorder %s10, 0
      %p65 = por %p63, %p64
      %p66 = scmp.ne.s32.totalorder %s58, %s60
      %p67 = scmp.eq.s32.totalorder %s15, 1
      %p68 = por %p66, %p67
      %p69 = scmp.ne.s32.totalorder %s60, %s61
      %p70 = scmp.eq.s32.totalorder %s15, 0
      %p71 = por %p69, %p70
      %p72 = scmp.ne.s32.totalorder %s60, %s61
      %p73 = scmp.eq.s32.totalorder %s16, 1
      %p74 = por %p72, %p73
      %p76 = scmp.ne.s32.totalorder %s61, %s75
      %p77 = scmp.eq.s32.totalorder %s16, 0
      %p78 = por %p76, %p77
      %s80 = sadd.s32 %s79, 1
      %p83 = scmp.eq.s32.totalorder %s10, 1
      %p84 = scmp.ne.s32.totalorder %s79, %s81
      %p85 = scmp.eq.s32.totalorder %s10, 0
      %p86 = por %p84, %p85
      %p87 = scmp.ne.s32.totalorder %s79, %s81
      %p88 = scmp.eq.s32.totalorder %s15, 1
      %p89 = por %p87, %p88
      %p90 = scmp.ne.s32.totalorder %s81, %s82
      %p91 = scmp.eq.s32.totalorder %s15, 0
      %p92 = por %p90, %p91
      %p93 = scmp.ne.s32.totalorder %s81, %s82
      %p94 = scmp.eq.s32.totalorder %s16, 1
      %p95 = por %p93, %p94
      %p97 = scmp.ne.s32.totalorder %s82, %s96
      %p98 = scmp.eq.s32.totalorder %s16, 0
      %p99 = por %p97, %p98
      %p100 = scmp.le.s32.totalorder 1, %s10
      %p101 = scmp.lt.s32.totalorder %s10, 3
      %p102 = pnand %p100, %p101
      %p103 = pneg %p102
      // Predicated region
      $region9: #{detect_single_image.1} parent=5 // pred_check
        _
      $region10: #{detect_single_image.1} parent=5 // pred_check_branch
        %105 = sbr.rel (%p102) target = $region12
      $region11: #{detect_single_image.1} parent=5 // pred_region
        %s106 = ssub.s32 %s10, 1
        // Predicated region
        $region13: #{detect_single_image.1} parent=11 // pred_check
          %p107 = pneg %p71
        $region14: #{detect_single_image.1} parent=11 // pred_check_branch
          %109 = sbr.rel (%p107) target = $region16
        $region15: #{detect_single_image.1} parent=11 // pred_region
          %s111 = ssub.s32 16, 16
          %112 = vsyncadd [#allocation6], %s111
          %s114 = sshll.u32 %s1, 4
          %s115 = int_to_ptr.vmem [resolvable:$true] %s114
          %117 = dma.vmem_to_smem %s115, 16, [#allocation4], [#allocation6]
        $region16: #{detect_single_image.1} parent=11 // pred_fallthru
          _
      $region12: #{detect_single_image.1} parent=5 // pred_fallthru
        _
      %p118 = scmp.lt.s32.totalorder %s10, 2
      // Predicated region
      $region17: #{detect_single_image.1} parent=5 // pred_check
        %p119 = pneg %p118
      $region18: #{detect_single_image.1} parent=5 // pred_check_branch
        %121 = sbr.rel (%p119) target = $region20
      $region19: #{detect_single_image.1} parent=5 // pred_region
        // Predicated region
        $region21: #{detect_single_image.1} parent=19 // pred_check
          %p122 = pneg %p44
        $region22: #{detect_single_image.1} parent=19 // pred_check_branch
          %124 = sbr.rel (%p122) target = $region24
        $region23: #{detect_single_image.1} parent=19 // pred_region
          %p125 = scmp.lt.s32.totalorder %s17, 1
          %s126 = scalar_select %p125, %s17, 1
          %p127 = scmp.lt.s32.totalorder %s18, 0
          %s128 = scalar_select %p127, %s18, 0
          %s129 = smul.addr %s126, 4
          %s130 = sadd.s32 %s128, %s129
          %s131 = smul.addr %s130, 2
          %s132 = scalar_lea.vmem %s0, %s131
        $region24: #{detect_single_image.1} parent=19 // pred_fallthru
          _
      $region20: #{detect_single_image.1} parent=5 // pred_fallthru
        _
      %p133 = scmp.le.s32.totalorder 1, %s10
      %p134 = scmp.lt.s32.totalorder %s10, 3
      %p135 = pnand %p133, %p134
      %p136 = pneg %p135
      // Predicated region
      $region25: #{detect_single_image.1} parent=5 // pred_check
        _
      $region26: #{detect_single_image.1} parent=5 // pred_check_branch
        %138 = sbr.rel (%p135) target = $region28
      $region27: #{detect_single_image.1} parent=5 // pred_region
        %s139 = ssub.s32 %s10, 1
        // Predicated region
        $region29: #{detect_single_image.1} parent=27 // pred_check
          %p140 = pneg %p71
        $region30: #{detect_single_image.1} parent=27 // pred_check_branch
          %142 = sbr.rel (%p140) target = $region32
        $region31: #{detect_single_image.1} parent=27 // pred_region
          %143 = dma.done [#allocation6], 16
        $region32: #{detect_single_image.1} parent=27 // pred_fallthru
          _
        %144 = sfence
        %p145 = scmp.lt.s32.totalorder %s19, 1
        %s146 = scalar_select %p145, %s19, 1
        %p147 = scmp.lt.s32.totalorder %s20, 0
        %s148 = scalar_select %p147, %s20, 0
        %s149 = smul.addr %s146, 4
        %s150 = sadd.s32 %s148, %s149
        %s151 = smul.addr %s150, 2
        %s152 = scalar_lea.vmem %s0, %s151
        %p153 = pneg %p50
        %p154 = pneg %p47
        %p155 = pneg %p71
        %p156 = pneg %p68
        %p157 = pneg %p92
        %p158 = pneg %p89
        %p159 = scmp.lt.s32.totalorder %s19, 1
        %s160 = scalar_select %p159, %s19, 1
        %p161 = scmp.lt.s32.totalorder %s20, 0
        %s162 = scalar_select %p161, %s20, 0
        %s163 = smul.addr %s160, 4
        %s164 = sadd.s32 %s162, %s163
        %s165 = smul.addr %s164, 2
        %s166 = scalar_lea.vmem %s0, %s165
        %p167 = scmp.eq.s32.totalorder %s19, 0
        %p168 = scmp.eq.s32.totalorder %s20, 0
        %p169 = pnand %p167, %p168
        %p170 = pneg %p169
        %p171 = scmp.eq.s32.totalorder %s19, 1
        %p172 = pnand %p171, %p168
        %p173 = pneg %p172
        // Predicated region
        $region33: #{detect_single_image.1} parent=27 // pred_check
          _
        $region34: #{detect_single_image.1} parent=27 // pred_check_branch
          %175 = sbr.rel (%p169) target = $region36
        $region35: #{detect_single_image.1} parent=27 // pred_region
          %vm176 = vcmask 0
          %177 = vst.msk [vmem:[#allocation2] sm:$0x1] %vm176, -inf
          %178 = vst.msk [vmem:[#allocation3] sm:$0x1] %vm176, 0
        $region36: #{detect_single_image.1} parent=27 // pred_fallthru
          _
        %v179 = vld [vmem:[%s166] sm:$0x3]
        %s180 = scalar_lea.vmem %s166, 2
        %v181 = vld [vmem:[%s180] sm:$0x3]
        %s182 = scalar_lea.vmem %s166, 4
        %v183 = vld [vmem:[%s182] sm:$0x3]
        %s184 = scalar_lea.vmem %s166, 6
        %v185 = vld [vmem:[%s184] sm:$0x3]
        %s186 = sld [smem:[#allocation4]]
        %v187 = vstv %s186
        %v188 = vmul.f32 %v179, %v187
        %s189 = sld [smem:[#allocation4 + $0x1]]
        %v190 = vstv %s189
        %v191 = vmul.f32 %v181, %v190
        %v192 = vadd.f32 %v188, %v191
        %s193 = sld [smem:[#allocation4 + $0x2]]
        %v194 = vstv %s193
        %v195 = vmul.f32 %v183, %v194
        %v196 = vadd.f32 %v192, %v195
        %s197 = sld [smem:[#allocation4 + $0x3]]
        %v198 = vstv %s197
        %v199 = vmul.f32 %v185, %v198
        %v200 = vadd.f32 %v196, %v199
        %s201 = sld [smem:[#allocation4 + $0xc]]
        %v202 = vstv %s201
        %v203 = vadd.f32 %v200, %v202
        %s204 = sld [smem:[#allocation4 + $0x4]]
        %v205 = vstv %s204
        %v206 = vmul.f32 %v179, %v205
        %s207 = sld [smem:[#allocation4 + $0x5]]
        %v208 = vstv %s207
        %v209 = vmul.f32 %v181, %v208
        %v210 = vadd.f32 %v206, %v209
        %s211 = sld [smem:[#allocation4 + $0x6]]
        %v212 = vstv %s211
        %v213 = vmul.f32 %v183, %v212
        %v214 = vadd.f32 %v210, %v213
        %s215 = sld [smem:[#allocation4 + $0x7]]
        %v216 = vstv %s215
        %v217 = vmul.f32 %v185, %v216
        %v218 = vadd.f32 %v214, %v217
        %s219 = sld [smem:[#allocation4 + $0xd]]
        %v220 = vstv %s219
        %v221 = vadd.f32 %v218, %v220
        %v222 = vmax.f32 %v203, %v221
        %s223 = sld [smem:[#allocation4 + $0x8]]
        %v224 = vstv %s223
        %v225 = vmul.f32 %v179, %v224
        %s226 = sld [smem:[#allocation4 + $0x9]]
        %v227 = vstv %s226
        %v228 = vmul.f32 %v181, %v227
        %v229 = vadd.f32 %v225, %v228
        %s230 = sld [smem:[#allocation4 + $0xa]]
        %v231 = vstv %s230
        %v232 = vmul.f32 %v183, %v231
        %v233 = vadd.f32 %v229, %v232
        %s234 = sld [smem:[#allocation4 + $0xb]]
        %v235 = vstv %s234
        %v236 = vmul.f32 %v185, %v235
        %v237 = vadd.f32 %v233, %v236
        %s238 = sld [smem:[#allocation4 + $0xe]]
        %v239 = vstv %s238
        %v240 = vadd.f32 %v237, %v239
        %v241 = vmax.f32 %v222, %v240
        %v242 = vlaneseq
        %v243 = vshrl.u32 %v242, 7
        %v244 = vlaneseq
        %v245 = vand.u32 %v244, 127
        %v246 = vmul.u32 %v243, 128
        %v247 = vadd.s32 %v246, %v245
        %s248 = smul.u32 %s20, 256
        %v249 = vstv %s248
        %v250 = vadd.s32 %v247, %v249
        %vm251 = vcmask 1041408
        %v252 = vsel %vm251, %v241, -inf
        %253 = vmax.xlane.f32.xlu0 %v252
        %v254 = vpop.xlane.xlu0 %253
        %v255 = vsel %vm251, %v254, -inf
        %v256 = vrot.slane %v255, 4
        %v257 = vmax.f32 %v255, %v256
        %v258 = vrot.slane %v257, 2
        %v259 = vmax.f32 %v257, %v258
        %v260 = vrot.slane %v259, 1
        %v261 = vmax.f32 %v259, %v260
        %s262 = smul.u32 %s19, 256
        %v263 = vstv %s262
        %v264 = vadd.s32 %v250, %v263
        %vm265 = vcmp.eq.f32.partialorder %v241, %v261
        %v266 = vsel %vm265, %v264, 2147483647
        %v267 = vsel %vm251, %v266, 2147483647
        %v268 = vand.u32 %v267, 65535
        %v269 = vshra.s32 %v267, 16
        %v270 = vcvt.s32.f32 %v268
        %v271 = vcvt.s32.f32 %v269
        %272 = vmin.xlane.f32.xlu0 %v271
        %v273 = vpop.xlane.xlu0 %272
        %vm274 = vcmp.eq.f32.partialorder %v271, %v273
        %v275 = vsel %vm274, %v270, inf
        %276 = vmin.xlane.f32.xlu0 %v275
        %v277 = vpop.xlane.xlu0 %276
        %v278 = vcvt.f32.s32 %v277
        %v279 = vcvt.f32.s32 %v273
        %v280 = vshll.u32 %v279, 16
        %v281 = vadd.s32 %v280, %v278
        %v282 = vsel %vm251, %v281, 2147483647
        %v283 = vrot.slane %v282, 4
        %vm284 = vcmp.lt.s32.totalorder %v282, %v283
        %v285 = vsel %vm284, %v282, %v283
        %v286 = vrot.slane %v285, 2
        %vm287 = vcmp.lt.s32.totalorder %v285, %v286
        %v288 = vsel %vm287, %v285, %v286
        %v289 = vrot.slane %v288, 1
        %vm290 = vcmp.lt.s32.totalorder %v288, %v289
        %v291 = vsel %vm290, %v288, %v289
        %v292 = vld [vmem:[#allocation2] sm:$0x1]
        %vm293 = vcmp.gt.f32.partialorder %v261, %v292
        %v294 = vsel %vm293, %v261, %v292
        %vm295 = vcmask 0
        %296 = vst.msk [vmem:[#allocation2] sm:$0x1] %vm295, %v294
        %v297 = vld [vmem:[#allocation3] sm:$0x1]
        %v298 = vsel %vm293, %v291, %v297
        %299 = vst.msk [vmem:[#allocation3] sm:$0x1] %vm295, %v298
        // Predicated region
        $region37: #{detect_single_image.1} parent=27 // pred_check
          _
        $region38: #{detect_single_image.1} parent=27 // pred_check_branch
          %301 = sbr.rel (%p172) target = $region40
        $region39: #{detect_single_image.1} parent=27 // pred_region
          %v302 = vld [vmem:[#allocation3] sm:$0x1]
          %303 = vst.msk [vmem:[#allocation7] sm:$0x1] %vm295, %v302
        $region40: #{detect_single_image.1} parent=27 // pred_fallthru
          _
        // Predicated region
        $region41: #{detect_single_image.1} parent=27 // pred_check
          %p304 = pneg %p89
        $region42: #{detect_single_image.1} parent=27 // pred_check_branch
          %306 = sbr.rel (%p304) target = $region44
        $region43: #{detect_single_image.1} parent=27 // pred_region
          %s308 = ssub.s32 16, 16
          %309 = vsyncadd [#allocation5], %s308
          %s311 = sshll.u32 [#allocation7], 4
          %s312 = int_to_ptr.vmem [resolvable:$true] %s311
          %314 = dma.vmem_to_hbm [thread:$0]  %s312, 16, %s2, [#allocation5]
        $region44: #{detect_single_image.1} parent=27 // pred_fallthru
          _
        // Predicated region
        $region45: #{detect_single_image.1} parent=27 // pred_check
          %p315 = pneg %p89
        $region46: #{detect_single_image.1} parent=27 // pred_check_branch
          %317 = sbr.rel (%p315) target = $region48
        $region47: #{detect_single_image.1} parent=27 // pred_region
          %318 = dma.done [#allocation5], 16
        $region48: #{detect_single_image.1} parent=27 // pred_fallthru
          _
      $region28: #{detect_single_image.1} parent=5 // pred_fallthru
        _
      %p319 = scmp.le.s32.totalorder 2, %s10
      // Predicated region
      $region49: #{detect_single_image.1} parent=5 // pred_check
        %p320 = pneg %p319
      $region50: #{detect_single_image.1} parent=5 // pred_check_branch
        %322 = sbr.rel (%p320) target = $region52
      $region51: #{detect_single_image.1} parent=5 // pred_region
        %s323 = ssub.s32 %s10, 2
      $region52: #{detect_single_image.1} parent=5 // pred_fallthru
        _
    $region6: #{detect_single_image.1} parent=1 // loop_footer
      %s14 = sadd.s32 1, %s10
    $region7: #{detect_single_image.1} parent=1 // loop_footer_branch
      %9 = sbr.rel target = $region3
    $region8: #{detect_single_image.1} parent=1 // loop_exit
      _
    %324 = vsyncpa [#allocation5], 1
    %s325 = scalar_lea.sflag [#allocation5], 1
    %326 = vsyncpa %s325, 1
    %327 = vsyncpa [#allocation6], 1
    %s328 = scalar_lea.sflag [#allocation6], 1
    %329 = vsyncpa %s328, 1

</llo_original>
